<compile_context>
chip_gen: v7x
topology: tpu7x:2x2x1
jax: 0.10.0
libtpu: 0.0.40
codegen_flags: <defaults>
</compile_context>

<pallas_src>
import jax
import jax.numpy as jnp
from jax.experimental import pallas as pl
from jax.experimental.pallas import tpu as pltpu


def _static_risk_kernel(x_ref, z_ref):
    # x_ref: (TB, D)   -- t=0 risk row of each batch element in the tile.
    # z_ref: (TB, T*D) -- lane-dense flattened (T, D) output rows.
    D = x_ref.shape[-1]
    T = z_ref.shape[-1] // D
    first = x_ref[...]                       # (TB, D)
    # One dense full-lane store; lane replication is XLU/VPU filler work.
    z_ref[...] = jnp.tile(first, (1, T))     # (TB, T*D)


def _sublane_pack(dtype):
    """Rows per packed sublane group: 8 for f32, 16 for bf16, 32 for int8/fp8."""
    itemsize = jnp.dtype(dtype).itemsize
    return max(8, 8 * (4 // max(1, itemsize)))


def _target_tile_bytes():
    """(target output-tile bytes, is_megacore) per TPU generation."""
    kind = ""
    try:
        kind = jax.devices()[0].device_kind.lower()
    except Exception:
        pass
    if "v7" in kind:
        return 8 * 1024 * 1024, True    # 2 TCs/chip, 3.2 TB/s, 64 MiB VMEM
    if "v6" in kind:
        return 4 * 1024 * 1024, False
    return 2 * 1024 * 1024, False       # v5e / unknown: 16 MiB scoped default


def static_risk_forward(x, batch=None, *, force_pallas=False):
    """x: [B, T, D] array. Returns (z, None) matching the PyTorch module."""
    # TODO(synk): `batch` argument of the PyTorch forward is unused by StaticRisk.
    B, T, D = x.shape
    itemsize = jnp.dtype(x.dtype).itemsize
    out_bytes = B * T * D * itemsize

    # Small-shape fast path: Pallas launch overhead >> actual data movement.
    if not force_pallas and out_bytes < (1 << 20):
        return jnp.broadcast_to(x[:, :1, :], x.shape), None

    target_bytes, megacore = _target_tile_bytes()
    pack = _sublane_pack(x.dtype)
    row_bytes = T * D * itemsize

    # Batch rows per grid step, targeting ~target_bytes output tiles.
    tb = min(B, max(1, target_bytes // row_bytes))
    if megacore:
        # Ensure at least 2 grid steps so both v7x TensorCores get work.
        tb = min(tb, max(1, pl.cdiv(B, 2)))
    if tb < B:
        # Block sublane dim must be a multiple of the packing (or the full B).
        if tb < pack:
            tb = min(B, pack)
        else:
            tb -= tb % pack
    grid_b = pl.cdiv(B, tb)

    # Only the t=0 rows ever leave HBM as kernel input (B*D elements).
    x0 = x[:, 0, :]                                   # (B, D)

    cost = pl.CostEstimate(
        flops=0,
        transcendentals=0,
        bytes_accessed=B * D * itemsize + B * T * D * itemsize,
    )

    z_flat = pl.pallas_call(
        _static_risk_kernel,
        out_shape=jax.ShapeDtypeStruct((B, T * D), x.dtype),
        grid_spec=pltpu.PrefetchScalarGridSpec(
            num_scalar_prefetch=0,
            grid=(grid_b,),
            in_specs=[
                # (tb, D): lane dim equals the full array dim D -> valid block.
                pl.BlockSpec((tb, D), lambda b: (b, 0)),
            ],
            # Lane-dense output slab; unmasked writeback when T*D % 128 == 0.
            out_specs=pl.BlockSpec((tb, T * D), lambda b: (b, 0)),
        ),
        compiler_params=pltpu.CompilerParams(
            dimension_semantics=("parallel",),
        ),
        cost_estimate=cost,
    )(x0)

    # Free row-major view back to the module's [B, T, D] layout.
    return z_flat.reshape(B, T, D), None


if __name__ == "__main__":
    # Small shapes consistent with the module: B=2, max_steps=8, risk_dimension=32.
    key = jax.random.PRNGKey(0)
    B, T, D = 2, 8, 32
    x = jax.random.uniform(key, (B, T, D), dtype=jnp.float32)
    # Zero out some "unobserved" later steps, as the docstring implies.
    mask = (jnp.arange(T)[None, :, None] < 5).astype(x.dtype)
    x = x * mask

    # Force the Pallas path so the kernel itself is exercised at this size
    # (the auto path would take the XLA broadcast fast path here).
    z_pallas, aux = static_risk_forward(x, force_pallas=True)
    z_pallas = jax.block_until_ready(z_pallas)

    # Also run the auto-dispatch path (fast path at this tiny size).
    z_auto, _ = static_risk_forward(x)
    z_auto = jax.block_until_ready(z_auto)

    # Reference semantics: z[:, t, :] == x[:, 0, :] for all t (bit-exact).
    ref = jnp.broadcast_to(x[:, 0:1, :], x.shape)
    assert aux is None
    assert z_pallas.shape == x.shape and z_pallas.dtype == x.dtype
    assert jnp.array_equal(z_pallas, ref), "Pallas path mismatch vs reference"
    assert jnp.array_equal(z_auto, ref), "fast path mismatch vs reference"
    print("KERNEL_OK")
</pallas_src>

<mosaic_0001>
module attributes {stable_mosaic.version = 11 : i64} {
  func.func @_static_risk_kernel(%arg0: i32, %arg1: memref<2x32xf32, #tpu.memory_space<vmem>>, %arg2: memref<2x256xf32, #tpu.memory_space<vmem>>) attributes {dimension_semantics = [#tpu.dimension_semantics<parallel>], iteration_bounds = array<i64: 1>, scalar_prefetch = 0 : i64, scratch_operands = 0 : i64, tpu.core_type = #tpu.core_type<tc>, window_params = [{transform_indices = @transform_0, window_bounds = array<i64: 2, 32>}, {transform_indices = @transform_1, window_bounds = array<i64: 2, 256>}]} {
    %c0 = arith.constant 0 : index
    %c0_0 = arith.constant 0 : index
    %0 = vector.load %arg1[%c0, %c0_0] : memref<2x32xf32, #tpu.memory_space<vmem>>, vector<2x32xf32>
    %1 = tpu.concatenate %0, %0, %0, %0, %0, %0, %0, %0 in 1 : vector<2x32xf32>, vector<2x32xf32>, vector<2x32xf32>, vector<2x32xf32>, vector<2x32xf32>, vector<2x32xf32>, vector<2x32xf32>, vector<2x32xf32> -> vector<2x256xf32>
    %c0_1 = arith.constant 0 : index
    %c0_2 = arith.constant 0 : index
    %2 = vector.load %arg2[%c0_1, %c0_2] : memref<2x256xf32, #tpu.memory_space<vmem>>, vector<2x256xf32>
    tpu.vector_store %arg2[%c0_1, %c0_2], %1 {strides = array<i32>} : memref<2x256xf32, #tpu.memory_space<vmem>>, vector<2x256xf32>,
    return
  }
  func.func @transform_0(%arg0: i32) -> (i32, i32) {
    %c0_i32 = arith.constant 0 : i32
    %c0_i32_0 = arith.constant 0 : i32
    return %arg0, %c0_i32 : i32, i32
  }
  func.func @transform_1(%arg0: i32) -> (i32, i32) {
    %c0_i32 = arith.constant 0 : i32
    %c0_i32_0 = arith.constant 0 : i32
    return %arg0, %c0_i32 : i32, i32
  }
}

</mosaic_0001>

<llo_original>
// kernel: tpu_custom_call.1
$region0: #{tpu_custom_call.1}
  #allocation0 [shape = 'u32[]', space=smem, size = 0x4, offset = 0x4, fixed_abs, tag = 'smem constant byte address 0x4 - core index']
  #allocation1 [shape = 'u32[144,128]{1,0:T(1,128)}', space=vmem, size = 0x12000, scoped, tag = 'internal scratch']
  %s0 = inlined_call_operand.hbm [shape: f32[2,32], index: 0, kind: input, shape index: {}]
  %s1 = inlined_call_operand.hbm [shape: f32[2,256], index: 1, kind: output, shape index: {}]
  %s2 = sld [smem:[#allocation0]]
  $region18: #{tpu_custom_call.1} parent=0
    _
  %s4 = ssub.s32 1, %s2
  %s5 = scalar_select 0, %s4, %s2
  $region1: #{tpu_custom_call.1} parent=0
    #allocation2 [shape = 'u8[1024]{0}', space=vmem, size = 0x400, scoped, tag = 'input window, operand 0, single buffered']
    #allocation3 [shape = 's32[1]{0}', space=sflag, size = 0x4, scoped, tag = 'scoped memory for tpu_custom_call.1']
    #allocation4 [shape = 's32[1]{0}', space=sflag, size = 0x4, scoped, tag = 'scoped memory for tpu_custom_call.1']
    #allocation5 [shape = 'u8[2048]{0}', space=vmem, size = 0x800, scoped, tag = 'output window, operand 0, single buffered']
    %6 = vsyncpa [#allocation3], 0
    %7 = vsyncpa [#allocation4], 0
    // Predicated region
    $region2: #{tpu_custom_call.1} parent=1 // pred_check
      _
    $region3: #{tpu_custom_call.1} parent=1 // pred_check_branch
      %9 = sbr.rel (0) target = $region5
    $region4: #{tpu_custom_call.1} parent=1 // pred_region
      %s11 = ssub.s32 32, 32
      %12 = vsyncadd [#allocation3], %s11
      %s14 = sshll.u32 [#allocation2], 4
      %s15 = int_to_ptr.vmem [resolvable:$true] %s14
      %17 = dma.hbm_to_vmem [thread:$0]  %s0, 32, %s15, [#allocation3]
    $region5: #{tpu_custom_call.1} parent=1 // pred_fallthru
      _
    // Predicated region
    $region6: #{tpu_custom_call.1} parent=1 // pred_check
      _
    $region7: #{tpu_custom_call.1} parent=1 // pred_check_branch
      %19 = sbr.rel (0) target = $region9
    $region8: #{tpu_custom_call.1} parent=1 // pred_region
      %20 = dma.done [#allocation3], 32
    $region9: #{tpu_custom_call.1} parent=1 // pred_fallthru
      _
    %v21 = vld [vmem:[#allocation2] sm:$0x3]
    %23 = vrot.lane.b32.xlu0 %v21, 32
    %v24 = vpop.permute.xlu0 %23
    %26 = vrot.lane.b32.xlu0 %v21, 64
    %v27 = vpop.permute.xlu0 %26
    %29 = vrot.lane.b32.xlu0 %v21, 96
    %v30 = vpop.permute.xlu0 %29
    %vm32 = vcmask 261120
    %v33 = vsel %vm32, %v21, %v24
    %vm34 = vcmask 523264
    %v35 = vsel %vm34, %v33, %v27
    %vm36 = vcmask 785408
    %v37 = vsel %vm36, %v35, %v30
    %v39 = vcombine.low %v37, %v37
    %v41 = vunpack.c.l.s4 1983009808
    %v42 = vunpack.c.0.s8 %v41
    %v43 = vlaneseq
    %v44 = vshrl.u32 %v43, 7
    %v45 = vsub.s32 %v42, %v44
    %v46 = vrot.slane %v39, %v45
    %48 = vst [vmem:[#allocation5] sm:$0xf] %v46
    // Predicated region
    $region10: #{tpu_custom_call.1} parent=1 // pred_check
      _
    $region11: #{tpu_custom_call.1} parent=1 // pred_check_branch
      %50 = sbr.rel (0) target = $region13
    $region12: #{tpu_custom_call.1} parent=1 // pred_region
      %s52 = ssub.s32 64, 64
      %53 = vsyncadd [#allocation4], %s52
      %s55 = sshll.u32 [#allocation5], 4
      %s56 = int_to_ptr.vmem [resolvable:$true] %s55
      %58 = dma.vmem_to_hbm [thread:$0]  %s56, 64, %s1, [#allocation4]
    $region13: #{tpu_custom_call.1} parent=1 // pred_fallthru
      _
    // Predicated region
    $region14: #{tpu_custom_call.1} parent=1 // pred_check
      _
    $region15: #{tpu_custom_call.1} parent=1 // pred_check_branch
      %60 = sbr.rel (0) target = $region17
    $region16: #{tpu_custom_call.1} parent=1 // pred_region
      %61 = dma.done [#allocation4], 64
    $region17: #{tpu_custom_call.1} parent=1 // pred_fallthru
      _
    %62 = vsyncpa [#allocation3], 1
    %63 = vsyncpa [#allocation4], 1

</llo_original>
